<compile_context>
chip_gen: v5e
topology: v5e:2x2
jax: 0.10.0
libtpu: 0.0.40
codegen_flags: <defaults>
</compile_context>

<pallas_src>
import functools

import jax
import jax.numpy as jnp
from jax import lax
from jax.experimental import pallas as pl
from jax.experimental.pallas import tpu as pltpu


def _cdiv(a, b):
    return -(-a // b)


def _round_up(a, b):
    return _cdiv(a, b) * b


# ----------------------------- Pallas kernel ------------------------------ #
def _make_conv_bn_relu_kernel(kh, kw, Wp, Ci, m_pad):
    """Fused conv + folded-BN + ReLU kernel for static geometry.

    Grid: (N, n_row_blocks, n_cout_tiles)  -- Cout tiles innermost.

    Refs (per grid step):
      x_ref:     (1, 1, Ci, L_rb)  bf16  padded input window for this row block
      w_ref:     (tco, K)          bf16  K = kh*kw*Ci, tap-major / channel-minor
      scale_ref: (tco, 1)          f32   folded BN scale
      bias_ref:  (tco, 1)          f32   folded BN bias (incl. conv bias)
      o_ref:     (1, tco, m_pad)   bf16  lane-dense, Cout-major output block
      col_ref:   (K, m_pad)        bf16  VMEM im2col scratch (persistent)
    """

    def kernel(x_ref, w_ref, scale_ref, bias_ref, o_ref, col_ref):
        # Build the in-VMEM im2col slab once per (image, row block); it is
        # reused across all Cout tiles (innermost, "arbitrary" grid axis).
        @pl.when(pl.program_id(2) == 0)
        def _():
            for dy in range(kh):
                for dx in range(kw):
                    r = dy * kw + dx
                    s = dy * Wp + dx                 # pure shift (stride-1 taps)
                    col_ref[r * Ci:(r + 1) * Ci, :] = x_ref[0, 0, :, s:s + m_pad]

        # Single big-K MXU matmul, f32 accumulation.
        y = jnp.dot(w_ref[...], col_ref[...], preferred_element_type=jnp.float32)
        y = y * scale_ref[...] + bias_ref[...]        # folded BN + conv bias
        o_ref[0, :, :] = jnp.maximum(y, 0.0).astype(o_ref.dtype)

    return kernel


# --------------------------- hardware heuristics --------------------------- #
def _hardware_budget():
    """(vmem_budget_bytes, cout_tile_cap), chosen per TPU generation."""
    vmem_cap = 64 * 2 ** 20
    tco_cap = 128
    try:
        cap = int(pltpu.get_tpu_info().vmem_capacity_bytes)
        if cap >= 16 * 2 ** 20:          # sanity: must look like bytes
            vmem_cap = cap
    except Exception:
        pass
    try:
        kind = jax.devices()[0].device_kind.lower()
        # v6e / v7x have 2x256x256 MXUs; v2-v5 generations are 128x128.
        if not any(f"v{g}" in kind for g in (2, 3, 4, 5)):
            tco_cap = 256
    except Exception:
        pass
    if vmem_cap <= 64 * 2 ** 20:         # v7x-class chip: leave headroom
        budget = min(vmem_cap, 48 * 2 ** 20)
    else:                                # v5e / v6e (128 MiB physical VMEM)
        budget = min(vmem_cap - 24 * 2 ** 20, 104 * 2 ** 20)
    return int(budget), tco_cap


def _geometry(Ho_d, Wp, kh, kw, tH):
    """Row-block geometry for tH output rows per block."""
    n_rb = _cdiv(Ho_d, tH)
    m_rb = tH * Wp                                   # useful lanes per block
    m_pad = _round_up(m_rb, 128)                     # lane-dense store width
    tail = (kw - 1) + (m_pad - m_rb)                 # keep last tap slice in-bounds
    window_rows = tH + kh - 1 + _cdiv(tail, Wp)      # rows per input window (halo incl.)
    L_rb = window_rows * Wp
    return n_rb, m_rb, m_pad, window_rows, L_rb


def _choose_row_tile(Ho_d, Wp, kh, kw, Ci, tco, budget, row_block_rows):
    if row_block_rows is not None:
        return max(1, min(Ho_d, int(row_block_rows)))
    K = kh * kw * Ci
    tH = Ho_d
    while True:
        _, _, m_pad, _, L_rb = _geometry(Ho_d, Wp, kh, kw, tH)
        fp = (2 * Ci * L_rb * 2          # x window, double-buffered, bf16
              + 2 * tco * K * 2          # weight tile, double-buffered, bf16
              + K * m_pad * 2            # im2col VMEM scratch
              + 2 * tco * m_pad * 2      # bf16 output block, double-buffered
              + tco * m_pad * 4)         # f32 matmul result staging
        if tH == 1 or (fp <= budget // 2 and m_pad <= 16384):
            return tH
        tH = max(1, tH // 2)


# ------------------------------ JAX wrapper -------------------------------- #
def basic_conv2d_forward(x, params, *, stride=1, padding=0,
                         use_batchnorm=True, eps=1e-3, row_block_rows=None):
    """Forward of BasicConv2d.  x: NCHW float32.  Returns NCHW float32."""
    w = params["conv_w"].astype(jnp.float32)          # (Cout, Cin, kh, kw)
    b = params["conv_b"].astype(jnp.float32)          # (Cout,)
    Cout, Cin, kh, kw = w.shape
    N, _, H, W = x.shape

    Hp, Wp = H + 2 * padding, W + 2 * padding
    Ho_d, Wo_d = Hp - kh + 1, Wp - kw + 1              # dense (stride-1) output

    budget, tco_cap = _hardware_budget()
    tco = min(tco_cap, _round_up(Cout, 8))             # Cout tile (multiple of 8)
    n_co = _cdiv(Cout, tco)
    Cout_p = n_co * tco

    # Pad Cin to the bf16 sublane packing so every im2col store is aligned.
    Ci = _round_up(Cin, 16)
    K = kh * kw * Ci

    tH = _choose_row_tile(Ho_d, Wp, kh, kw, Ci, tco, budget, row_block_rows)
    n_rb, m_rb, m_pad, window_rows, L_rb = _geometry(Ho_d, Wp, kh, kw, tH)
    rows_needed = (n_rb - 1) * tH + window_rows
    bottom_pad = max(padding, rows_needed - H - padding)

    # ---- input: cast to bf16 FIRST, then ONE pad (channels + spatial + tail).
    xb = x.astype(jnp.bfloat16)
    xp = jnp.pad(xb, ((0, 0), (0, Ci - Cin),
                      (padding, bottom_pad), (padding, padding)))
    # Per-row-block input windows (kh-1 halo rows).  For n_rb == 1 this is a
    # no-op view that XLA fuses with the pad; for n_rb > 1 the small halo
    # duplication is the price for fully static in-kernel offsets.
    blocks = [lax.slice_in_dim(xp, t * tH, t * tH + window_rows, axis=2)
              for t in range(n_rb)]
    x_rb = jnp.stack(blocks, axis=1).reshape(N, n_rb, Ci, L_rb)

    # ---- weights -> (Cout_p, kh*kw*Ci), tap-major / channel-minor, bf16 -----
    w_t = jnp.pad(w.transpose(0, 2, 3, 1),            # (Cout, kh, kw, Cin)
                  ((0, Cout_p - Cout), (0, 0), (0, 0), (0, Ci - Cin)))
    w2 = w_t.reshape(Cout_p, K).astype(jnp.bfloat16)

    # ---- fold BatchNorm (running stats, eval mode) + conv bias --------------
    if use_batchnorm:
        gamma = params["bn_gamma"].astype(jnp.float32)
        beta = params["bn_beta"].astype(jnp.float32)
        mean = params["bn_mean"].astype(jnp.float32)
        var = params["bn_var"].astype(jnp.float32)
        inv_std = lax.rsqrt(var + eps)
        scale = gamma * inv_std                        # (Cout,)
        bias = beta + (b - mean) * scale               # (Cout,)
    else:
        scale = jnp.ones((Cout,), jnp.float32)
        bias = b
    scale2 = jnp.pad(scale, (0, Cout_p - Cout)).reshape(Cout_p, 1)
    bias2 = jnp.pad(bias, (0, Cout_p - Cout)).reshape(Cout_p, 1)

    kernel = _make_conv_bn_relu_kernel(kh, kw, Wp, Ci, m_pad)

    out_full = pl.pallas_call(
        kernel,
        out_shape=jax.ShapeDtypeStruct((N, Cout_p, n_rb * m_pad), jnp.bfloat16),
        grid_spec=pltpu.PrefetchScalarGridSpec(
            num_scalar_prefetch=0,
            grid=(N, n_rb, n_co),                      # Cout tiles innermost so
            in_specs=[                                 # x / im2col reuse across them
                pl.BlockSpec((1, 1, Ci, L_rb), lambda n, t, j: (n, t, 0, 0)),
                pl.BlockSpec((tco, K), lambda n, t, j: (j, 0)),
                pl.BlockSpec((tco, 1), lambda n, t, j: (j, 0)),
                pl.BlockSpec((tco, 1), lambda n, t, j: (j, 0)),
            ],
            out_specs=pl.BlockSpec((1, tco, m_pad), lambda n, t, j: (n, j, t)),
            scratch_shapes=[pltpu.VMEM((K, m_pad), jnp.bfloat16)],
        ),
        compiler_params=pltpu.CompilerParams(
            # The Cout-tile axis must stay sequential/in-order: the im2col
            # scratch is built at j == 0 and reused for j > 0.
            dimension_semantics=("parallel", "parallel", "arbitrary"),
            vmem_limit_bytes=int(budget)),
    )(x_rb, w2, scale2, bias2)

    # Crop (on bf16): drop per-block lane padding, wrap-around columns, padded
    # rows/channels; the strided slice handles stride > 1.
    out = out_full.reshape(N, Cout_p, n_rb, m_pad)[:, :Cout, :, :m_rb]
    out = out.reshape(N, Cout, n_rb * tH, Wp)
    out = out[:, :, :Ho_d:stride, :Wo_d:stride].astype(jnp.float32)
    return out


def init_params(key, in_channels, out_channels, kh, kw):
    k1, k2, k3, k4 = jax.random.split(key, 4)
    fan_in = in_channels * kh * kw
    bound = 1.0 / (fan_in ** 0.5)
    return {
        "conv_w": jax.random.uniform(k1, (out_channels, in_channels, kh, kw),
                                     jnp.float32, -bound, bound),
        "conv_b": jax.random.uniform(k2, (out_channels,), jnp.float32,
                                     -bound, bound),
        "bn_gamma": jnp.ones((out_channels,), jnp.float32),
        "bn_beta": jnp.zeros((out_channels,), jnp.float32),
        "bn_mean": 0.1 * jax.random.normal(k3, (out_channels,), jnp.float32),
        "bn_var": jnp.abs(jax.random.normal(k4, (out_channels,),
                                            jnp.float32)) + 0.5,
    }


def _reference(x, params, stride, padding, use_batchnorm):
    ref = lax.conv_general_dilated(
        x, params["conv_w"], window_strides=(stride, stride),
        padding=((padding, padding), (padding, padding)),
        dimension_numbers=("NCHW", "OIHW", "NCHW"))
    ref = ref + params["conv_b"][None, :, None, None]
    if use_batchnorm:
        inv_std = 1.0 / jnp.sqrt(params["bn_var"] + 1e-3)
        ref = (ref - params["bn_mean"][None, :, None, None]) * \
              (params["bn_gamma"] * inv_std)[None, :, None, None] + \
              params["bn_beta"][None, :, None, None]
    return jnp.maximum(ref, 0.0)


if __name__ == "__main__":
    key = jax.random.PRNGKey(0)
    kx, kp = jax.random.split(key)

    # Small shapes consistent with the module: N=2, Cin=4, H=W=16,
    # Conv2d(4, 8, kernel_size=3, padding=1), use_batchnorm=True.
    N, Cin, H, W = 2, 4, 16, 16
    Cout, kh, kw = 8, 3, 3
    x = jax.random.normal(kx, (N, Cin, H, W), jnp.float32)
    params = init_params(kp, Cin, Cout, kh, kw)

    # Main config (auto row tiling -> single row block at this size).
    fwd = jax.jit(functools.partial(basic_conv2d_forward, stride=1, padding=1,
                                    use_batchnorm=True))
    y = fwd(x, params)
    jax.block_until_ready(y)
    ref = _reference(x, params, 1, 1, True)
    assert y.shape == (N, Cout, H, W)
    assert jnp.allclose(y, ref, atol=5e-2, rtol=5e-2)

    # Exercise the multi-row-block path (forced 4-row tiles -> 4 row blocks).
    fwd_rb = jax.jit(functools.partial(basic_conv2d_forward, stride=1,
                                       padding=1, use_batchnorm=True,
                                       row_block_rows=4))
    y_rb = fwd_rb(x, params)
    jax.block_until_ready(y_rb)
    assert jnp.allclose(y_rb, ref, atol=5e-2, rtol=5e-2)

    # Exercise stride=2 + no-BatchNorm variant.
    fwd_s2 = jax.jit(functools.partial(basic_conv2d_forward, stride=2,
                                       padding=1, use_batchnorm=False))
    y_s2 = fwd_s2(x, params)
    jax.block_until_ready(y_s2)
    ref_s2 = _reference(x, params, 2, 1, False)
    assert y_s2.shape == ref_s2.shape
    assert jnp.allclose(y_s2, ref_s2, atol=5e-2, rtol=5e-2)

    print("KERNEL_OK")
</pallas_src>

<mosaic_0001>
module attributes {stable_mosaic.version = 11 : i64} {
  func.func @kernel(%arg0: i32, %arg1: i32, %arg2: i32, %arg3: memref<1x1x16x432xbf16, #tpu.memory_space<vmem>>, %arg4: memref<8x144xbf16, #tpu.memory_space<vmem>>, %arg5: memref<8x1xf32, #tpu.memory_space<vmem>>, %arg6: memref<8x1xf32, #tpu.memory_space<vmem>>, %arg7: memref<1x8x384xbf16, #tpu.memory_space<vmem>>, %arg8: memref<144x384xbf16, #tpu.memory_space<vmem>>) attributes {dimension_semantics = [#tpu.dimension_semantics<parallel>, #tpu.dimension_semantics<parallel>, #tpu.dimension_semantics<arbitrary>], iteration_bounds = array<i64: 2, 1, 1>, scalar_prefetch = 0 : i64, scratch_operands = 1 : i64, tpu.core_type = #tpu.core_type<tc>, window_params = [{transform_indices = @transform_0, window_bounds = array<i64: 1, 1, 16, 432>}, {transform_indices = @transform_1, window_bounds = array<i64: 8, 144>}, {transform_indices = @transform_2, window_bounds = array<i64: 8, 1>}, {transform_indices = @transform_3, window_bounds = array<i64: 8, 1>}, {transform_indices = @transform_4, window_bounds = array<i64: 1, 8, 384>}]} {
    %c0_i32 = arith.constant 0 : i32
    %0 = arith.cmpi eq, %arg2, %c0_i32 : i32
    %1 = arith.extui %0 : i1 to i32
    %c0_i32_0 = arith.constant 0 : i32
    %2 = arith.cmpi ne, %1, %c0_i32_0 : i32
    scf.if %2 {
      %c0_12 = arith.constant 0 : index
      %c0_13 = arith.constant 0 : index
      %c0_14 = arith.constant 0 : index
      %c0_15 = arith.constant 0 : index
      %18 = vector.load %arg3[%c0_12, %c0_13, %c0_14, %c0_15] : memref<1x1x16x432xbf16, #tpu.memory_space<vmem>>, vector<1x1x16x384xbf16>
      %19 = vector.shape_cast %18 : vector<1x1x16x384xbf16> to vector<16x384xbf16>
      %c0_16 = arith.constant 0 : index
      %c0_17 = arith.constant 0 : index
      %20 = vector.load %arg8[%c0_16, %c0_17] : memref<144x384xbf16, #tpu.memory_space<vmem>>, vector<16x384xbf16>
      tpu.vector_store %arg8[%c0_16, %c0_17], %19 {strides = array<i32>} : memref<144x384xbf16, #tpu.memory_space<vmem>>, vector<16x384xbf16>,
      %c0_18 = arith.constant 0 : index
      %c0_19 = arith.constant 0 : index
      %c0_20 = arith.constant 0 : index
      %c1 = arith.constant 1 : index
      %21 = vector.load %arg3[%c0_18, %c0_19, %c0_20, %c1] : memref<1x1x16x432xbf16, #tpu.memory_space<vmem>>, vector<1x1x16x384xbf16>
      %22 = vector.shape_cast %21 : vector<1x1x16x384xbf16> to vector<16x384xbf16>
      %c16 = arith.constant 16 : index
      %c0_21 = arith.constant 0 : index
      %23 = vector.load %arg8[%c16, %c0_21] : memref<144x384xbf16, #tpu.memory_space<vmem>>, vector<16x384xbf16>
      tpu.vector_store %arg8[%c16, %c0_21], %22 {strides = array<i32>} : memref<144x384xbf16, #tpu.memory_space<vmem>>, vector<16x384xbf16>,
      %c0_22 = arith.constant 0 : index
      %c0_23 = arith.constant 0 : index
      %c0_24 = arith.constant 0 : index
      %c2 = arith.constant 2 : index
      %24 = vector.load %arg3[%c0_22, %c0_23, %c0_24, %c2] : memref<1x1x16x432xbf16, #tpu.memory_space<vmem>>, vector<1x1x16x384xbf16>
      %25 = vector.shape_cast %24 : vector<1x1x16x384xbf16> to vector<16x384xbf16>
      %c32 = arith.constant 32 : index
      %c0_25 = arith.constant 0 : index
      %26 = vector.load %arg8[%c32, %c0_25] : memref<144x384xbf16, #tpu.memory_space<vmem>>, vector<16x384xbf16>
      tpu.vector_store %arg8[%c32, %c0_25], %25 {strides = array<i32>} : memref<144x384xbf16, #tpu.memory_space<vmem>>, vector<16x384xbf16>,
      %c0_26 = arith.constant 0 : index
      %c0_27 = arith.constant 0 : index
      %c0_28 = arith.constant 0 : index
      %c18 = arith.constant 18 : index
      %27 = vector.load %arg3[%c0_26, %c0_27, %c0_28, %c18] : memref<1x1x16x432xbf16, #tpu.memory_space<vmem>>, vector<1x1x16x384xbf16>
      %28 = vector.shape_cast %27 : vector<1x1x16x384xbf16> to vector<16x384xbf16>
      %c48 = arith.constant 48 : index
      %c0_29 = arith.constant 0 : index
      %29 = vector.load %arg8[%c48, %c0_29] : memref<144x384xbf16, #tpu.memory_space<vmem>>, vector<16x384xbf16>
      tpu.vector_store %arg8[%c48, %c0_29], %28 {strides = array<i32>} : memref<144x384xbf16, #tpu.memory_space<vmem>>, vector<16x384xbf16>,
      %c0_30 = arith.constant 0 : index
      %c0_31 = arith.constant 0 : index
      %c0_32 = arith.constant 0 : index
      %c19 = arith.constant 19 : index
      %30 = vector.load %arg3[%c0_30, %c0_31, %c0_32, %c19] : memref<1x1x16x432xbf16, #tpu.memory_space<vmem>>, vector<1x1x16x384xbf16>
      %31 = vector.shape_cast %30 : vector<1x1x16x384xbf16> to vector<16x384xbf16>
      %c64 = arith.constant 64 : index
      %c0_33 = arith.constant 0 : index
      %32 = vector.load %arg8[%c64, %c0_33] : memref<144x384xbf16, #tpu.memory_space<vmem>>, vector<16x384xbf16>
      tpu.vector_store %arg8[%c64, %c0_33], %31 {strides = array<i32>} : memref<144x384xbf16, #tpu.memory_space<vmem>>, vector<16x384xbf16>,
      %c0_34 = arith.constant 0 : index
      %c0_35 = arith.constant 0 : index
      %c0_36 = arith.constant 0 : index
      %c20 = arith.constant 20 : index
      %33 = vector.load %arg3[%c0_34, %c0_35, %c0_36, %c20] : memref<1x1x16x432xbf16, #tpu.memory_space<vmem>>, vector<1x1x16x384xbf16>
      %34 = vector.shape_cast %33 : vector<1x1x16x384xbf16> to vector<16x384xbf16>
      %c80 = arith.constant 80 : index
      %c0_37 = arith.constant 0 : index
      %35 = vector.load %arg8[%c80, %c0_37] : memref<144x384xbf16, #tpu.memory_space<vmem>>, vector<16x384xbf16>
      tpu.vector_store %arg8[%c80, %c0_37], %34 {strides = array<i32>} : memref<144x384xbf16, #tpu.memory_space<vmem>>, vector<16x384xbf16>,
      %c0_38 = arith.constant 0 : index
      %c0_39 = arith.constant 0 : index
      %c0_40 = arith.constant 0 : index
      %c36 = arith.constant 36 : index
      %36 = vector.load %arg3[%c0_38, %c0_39, %c0_40, %c36] : memref<1x1x16x432xbf16, #tpu.memory_space<vmem>>, vector<1x1x16x384xbf16>
      %37 = vector.shape_cast %36 : vector<1x1x16x384xbf16> to vector<16x384xbf16>
      %c96 = arith.constant 96 : index
      %c0_41 = arith.constant 0 : index
      %38 = vector.load %arg8[%c96, %c0_41] : memref<144x384xbf16, #tpu.memory_space<vmem>>, vector<16x384xbf16>
      tpu.vector_store %arg8[%c96, %c0_41], %37 {strides = array<i32>} : memref<144x384xbf16, #tpu.memory_space<vmem>>, vector<16x384xbf16>,
      %c0_42 = arith.constant 0 : index
      %c0_43 = arith.constant 0 : index
      %c0_44 = arith.constant 0 : index
      %c37 = arith.constant 37 : index
      %39 = vector.load %arg3[%c0_42, %c0_43, %c0_44, %c37] : memref<1x1x16x432xbf16, #tpu.memory_space<vmem>>, vector<1x1x16x384xbf16>
      %40 = vector.shape_cast %39 : vector<1x1x16x384xbf16> to vector<16x384xbf16>
      %c112 = arith.constant 112 : index
      %c0_45 = arith.constant 0 : index
      %41 = vector.load %arg8[%c112, %c0_45] : memref<144x384xbf16, #tpu.memory_space<vmem>>, vector<16x384xbf16>
      tpu.vector_store %arg8[%c112, %c0_45], %40 {strides = array<i32>} : memref<144x384xbf16, #tpu.memory_space<vmem>>, vector<16x384xbf16>,
      %c0_46 = arith.constant 0 : index
      %c0_47 = arith.constant 0 : index
      %c0_48 = arith.constant 0 : index
      %c38 = arith.constant 38 : index
      %42 = vector.load %arg3[%c0_46, %c0_47, %c0_48, %c38] : memref<1x1x16x432xbf16, #tpu.memory_space<vmem>>, vector<1x1x16x384xbf16>
      %43 = vector.shape_cast %42 : vector<1x1x16x384xbf16> to vector<16x384xbf16>
      %c128 = arith.constant 128 : index
      %c0_49 = arith.constant 0 : index
      %44 = vector.load %arg8[%c128, %c0_49] : memref<144x384xbf16, #tpu.memory_space<vmem>>, vector<16x384xbf16>
      tpu.vector_store %arg8[%c128, %c0_49], %43 {strides = array<i32>} : memref<144x384xbf16, #tpu.memory_space<vmem>>, vector<16x384xbf16>,
    } else {
    }
    %c0 = arith.constant 0 : index
    %c0_1 = arith.constant 0 : index
    %3 = vector.load %arg4[%c0, %c0_1] : memref<8x144xbf16, #tpu.memory_space<vmem>>, vector<8x144xbf16>
    %c0_2 = arith.constant 0 : index
    %c0_3 = arith.constant 0 : index
    %4 = vector.load %arg8[%c0_2, %c0_3] : memref<144x384xbf16, #tpu.memory_space<vmem>>, vector<144x384xbf16>
    %cst = arith.constant dense<0.000000e+00> : vector<8x384xf32>
    %5 = tpu.matmul %3, %4, %cst {dimension_numbers = #tpu.dot_dimension_numbers<[1], [0], [0], [1], [0, 0, 1, 1], [], []>} : vector<8x144xbf16>, vector<144x384xbf16>, vector<8x384xf32> -> vector<8x384xf32>
    %c0_4 = arith.constant 0 : index
    %c0_5 = arith.constant 0 : index
    %6 = vector.load %arg5[%c0_4, %c0_5] : memref<8x1xf32, #tpu.memory_space<vmem>>, vector<8x1xf32>
    %7 = vector.broadcast %6 : vector<8x1xf32> to vector<8x384xf32>
    %8 = arith.mulf %5, %7 : vector<8x384xf32>
    %c0_6 = arith.constant 0 : index
    %c0_7 = arith.constant 0 : index
    %9 = vector.load %arg6[%c0_6, %c0_7] : memref<8x1xf32, #tpu.memory_space<vmem>>, vector<8x1xf32>
    %10 = vector.broadcast %9 : vector<8x1xf32> to vector<8x384xf32>
    %11 = arith.addf %8, %10 : vector<8x384xf32>
    %cst_8 = arith.constant 0.000000e+00 : f32
    %12 = vector.broadcast %cst_8 : f32 to vector<8x384xf32>
    %13 = arith.maximumf %11, %12 : vector<8x384xf32>
    %14 = arith.truncf %13 : vector<8x384xf32> to vector<8x384xbf16>
    %c0_9 = arith.constant 0 : index
    %c0_10 = arith.constant 0 : index
    %c0_11 = arith.constant 0 : index
    %15 = vector.load %arg7[%c0_9, %c0_10, %c0_11] : memref<1x8x384xbf16, #tpu.memory_space<vmem>>, vector<1x8x384xbf16>
    %16 = vector.shape_cast %15 : vector<1x8x384xbf16> to vector<8x384xbf16>
    %17 = vector.shape_cast %14 : vector<8x384xbf16> to vector<1x8x384xbf16>
    tpu.vector_store %arg7[%c0_9, %c0_10, %c0_11], %17 {strides = array<i32>} : memref<1x8x384xbf16, #tpu.memory_space<vmem>>, vector<1x8x384xbf16>,
    return
  }
  func.func @transform_0(%arg0: i32, %arg1: i32, %arg2: i32) -> (i32, i32, i32, i32) {
    %c0_i32 = arith.constant 0 : i32
    %c0_i32_0 = arith.constant 0 : i32
    %c0_i32_1 = arith.constant 0 : i32
    return %arg0, %arg1, %c0_i32, %c0_i32_0 : i32, i32, i32, i32
  }
  func.func @transform_1(%arg0: i32, %arg1: i32, %arg2: i32) -> (i32, i32) {
    %c0_i32 = arith.constant 0 : i32
    %c0_i32_0 = arith.constant 0 : i32
    return %arg2, %c0_i32 : i32, i32
  }
  func.func @transform_2(%arg0: i32, %arg1: i32, %arg2: i32) -> (i32, i32) {
    %c0_i32 = arith.constant 0 : i32
    %c0_i32_0 = arith.constant 0 : i32
    return %arg2, %c0_i32 : i32, i32
  }
  func.func @transform_3(%arg0: i32, %arg1: i32, %arg2: i32) -> (i32, i32) {
    %c0_i32 = arith.constant 0 : i32
    %c0_i32_0 = arith.constant 0 : i32
    return %arg2, %c0_i32 : i32, i32
  }
  func.func @transform_4(%arg0: i32, %arg1: i32, %arg2: i32) -> (i32, i32, i32) {
    %c0_i32 = arith.constant 0 : i32
    return %arg0, %arg2, %arg1 : i32, i32, i32
  }
}

</mosaic_0001>

<llo_original>
// kernel: basic_conv2d_forward.1
$region0: #{basic_conv2d_forward.1}
  #allocation0 [shape = 'u32[]', space=smem, size = 0x4, offset = 0x4, fixed_abs, tag = 'smem constant byte address 0x4 - core index']
  #allocation1 [shape = 'u32[72,128]{1,0:T(1,128)}', space=vmem, size = 0x9000, scoped, tag = 'internal scratch']
  #allocation2 [shape = 'bf16[144,384]{1,0:T(8,128)(2,1)}', space=vmem, size = 0x1b000, scoped, tag = 'scratch operand']
  %s0 = inlined_call_operand.vmem [shape: bf16[2,1,16,432], index: 0, kind: input, shape index: {}]
  %s1 = inlined_call_operand.vmem [shape: bf16[8,144], index: 1, kind: input, shape index: {}]
  %s2 = inlined_call_operand.vmem [shape: f32[8,1], index: 2, kind: input, shape index: {}]
  %s3 = inlined_call_operand.vmem [shape: f32[8,1], index: 3, kind: input, shape index: {}]
  %s4 = inlined_call_operand.vmem [shape: bf16[2,8,384], index: 4, kind: output, shape index: {}]
  %s5 = sld [smem:[#allocation0]]
  $region53: #{basic_conv2d_forward.1} parent=0
    _
  %s7 = ssub.s32 1, %s5
  %s8 = scalar_select 0, %s7, %s5
  loop: start=0, step=1, limit=4
  $region2: #{basic_conv2d_forward.1} parent=0 // loop_pre_header
    _
  $region3: #{basic_conv2d_forward.1} parent=0 // loop_header
    %s10 = sphi 0, %s14
    %p11 = scmp.ge.s32.totalorder %s10, 4
    %s17 = sphi 0, %s36
    %s18 = sphi 0, %s32
    %s19 = sphi 0, %s28
    %s20 = sphi 0, %s17
    %s21 = sphi 0, %s18
    %s22 = sphi 0, %s19
    %s23 = sphi 0, %s20
    %s24 = sphi 0, %s21
    %s25 = sphi 0, %s22
    %s41 = sphi 0, %s43
    %s44 = sphi 0, %s41
    %s45 = sphi 0, %s44
    %s61 = sphi 0, %s45
    %s67 = sphi 0, %s69
    %s70 = sphi 0, %s67
    %s71 = sphi 0, %s70
    %s87 = sphi 0, %s71
    %s93 = sphi 0, %s95
    %s96 = sphi 0, %s93
    %s97 = sphi 0, %s96
    %s113 = sphi 0, %s97
    %s119 = sphi 0, %s121
    %s122 = sphi 0, %s119
    %s123 = sphi 0, %s122
    %s139 = sphi 0, %s123
    %s149 = sphi 0, %s151
    %s152 = sphi 0, %s149
    %s153 = sphi 0, %s152
    %s169 = sphi 0, %s153
  $region4: #{basic_conv2d_forward.1} parent=0 // loop_header_branch
    %13 = sbr.rel (%p11) target = $region8
  $region5: #{basic_conv2d_forward.1} parent=0 // loop_body
    %s15 = ssub.s32 %s10, 1
    %s16 = ssub.s32 %s10, 2
    %s26 = sadd.s32 1, %s19
    %p27 = scmp.ge.s32.totalorder %s26, 1
    %s28 = scalar_select %p27, 0, %s26
    %s29 = sadd.s32 1, %s18
    %s30 = scalar_select %p27, %s29, %s18
    %p31 = scmp.ge.s32.totalorder %s30, 1
    %s32 = scalar_select %p31, 0, %s30
    %s33 = sadd.s32 1, %s17
    %s34 = scalar_select %p31, %s33, %s17
    %p35 = scmp.ge.s32.totalorder %s34, 2
    %s36 = scalar_select %p35, 0, %s34
    %s37 = ssub.s32 %s17, %s36
    %s38 = ssub.s32 %s18, %s32
    %s39 = sor.u32 %s37, %s38
    %p40 = scmp.eq.s32.totalorder %s39, 0
    %s42 = sadd.s32 %s41, 1
    %s43 = scalar_select %p40, %s41, %s42
    %p46 = pneg %p40
    %p47 = scmp.eq.s32.totalorder %s10, 1
    %p48 = por %p46, %p47
    %p49 = scmp.ne.s32.totalorder %s41, %s44
    %p50 = scmp.eq.s32.totalorder %s10, 0
    %p51 = por %p49, %p50
    %p52 = scmp.ne.s32.totalorder %s41, %s44
    %p53 = scmp.eq.s32.totalorder %s15, 1
    %p54 = por %p52, %p53
    %p55 = scmp.ne.s32.totalorder %s44, %s45
    %p56 = scmp.eq.s32.totalorder %s15, 0
    %p57 = por %p55, %p56
    %p58 = scmp.ne.s32.totalorder %s44, %s45
    %p59 = scmp.eq.s32.totalorder %s16, 1
    %p60 = por %p58, %p59
    %p62 = scmp.ne.s32.totalorder %s45, %s61
    %p63 = scmp.eq.s32.totalorder %s16, 0
    %p64 = por %p62, %p63
    %s65 = ssub.s32 %s19, %s28
    %p66 = scmp.eq.s32.totalorder %s65, 0
    %s68 = sadd.s32 %s67, 1
    %s69 = scalar_select %p66, %s67, %s68
    %p72 = pneg %p66
    %p73 = scmp.eq.s32.totalorder %s10, 1
    %p74 = por %p72, %p73
    %p75 = scmp.ne.s32.totalorder %s67, %s70
    %p76 = scmp.eq.s32.totalorder %s10, 0
    %p77 = por %p75, %p76
    %p78 = scmp.ne.s32.totalorder %s67, %s70
    %p79 = scmp.eq.s32.totalorder %s15, 1
    %p80 = por %p78, %p79
    %p81 = scmp.ne.s32.totalorder %s70, %s71
    %p82 = scmp.eq.s32.totalorder %s15, 0
    %p83 = por %p81, %p82
    %p84 = scmp.ne.s32.totalorder %s70, %s71
    %p85 = scmp.eq.s32.totalorder %s16, 1
    %p86 = por %p84, %p85
    %p88 = scmp.ne.s32.totalorder %s71, %s87
    %p89 = scmp.eq.s32.totalorder %s16, 0
    %p90 = por %p88, %p89
    %s91 = ssub.s32 %s19, %s28
    %p92 = scmp.eq.s32.totalorder %s91, 0
    %s94 = sadd.s32 %s93, 1
    %s95 = scalar_select %p92, %s93, %s94
    %p98 = pneg %p92
    %p99 = scmp.eq.s32.totalorder %s10, 1
    %p100 = por %p98, %p99
    %p101 = scmp.ne.s32.totalorder %s93, %s96
    %p102 = scmp.eq.s32.totalorder %s10, 0
    %p103 = por %p101, %p102
    %p104 = scmp.ne.s32.totalorder %s93, %s96
    %p105 = scmp.eq.s32.totalorder %s15, 1
    %p106 = por %p104, %p105
    %p107 = scmp.ne.s32.totalorder %s96, %s97
    %p108 = scmp.eq.s32.totalorder %s15, 0
    %p109 = por %p107, %p108
    %p110 = scmp.ne.s32.totalorder %s96, %s97
    %p111 = scmp.eq.s32.totalorder %s16, 1
    %p112 = por %p110, %p111
    %p114 = scmp.ne.s32.totalorder %s97, %s113
    %p115 = scmp.eq.s32.totalorder %s16, 0
    %p116 = por %p114, %p115
    %s117 = ssub.s32 %s19, %s28
    %p118 = scmp.eq.s32.totalorder %s117, 0
    %s120 = sadd.s32 %s119, 1
    %s121 = scalar_select %p118, %s119, %s120
    %p124 = pneg %p118
    %p125 = scmp.eq.s32.totalorder %s10, 1
    %p126 = por %p124, %p125
    %p127 = scmp.ne.s32.totalorder %s119, %s122
    %p128 = scmp.eq.s32.totalorder %s10, 0
    %p129 = por %p127, %p128
    %p130 = scmp.ne.s32.totalorder %s119, %s122
    %p131 = scmp.eq.s32.totalorder %s15, 1
    %p132 = por %p130, %p131
    %p133 = scmp.ne.s32.totalorder %s122, %s123
    %p134 = scmp.eq.s32.totalorder %s15, 0
    %p135 = por %p133, %p134
    %p136 = scmp.ne.s32.totalorder %s122, %s123
    %p137 = scmp.eq.s32.totalorder %s16, 1
    %p138 = por %p136, %p137
    %p140 = scmp.ne.s32.totalorder %s123, %s139
    %p141 = scmp.eq.s32.totalorder %s16, 0
    %p142 = por %p140, %p141
    %s143 = ssub.s32 %s17, %s36
    %s144 = ssub.s32 %s19, %s28
    %s145 = sor.u32 %s143, %s144
    %s146 = ssub.s32 %s18, %s32
    %s147 = sor.u32 %s145, %s146
    %p148 = scmp.eq.s32.totalorder %s147, 0
    %s150 = sadd.s32 %s149, 1
    %s151 = scalar_select %p148, %s149, %s150
    %p154 = pneg %p148
    %p155 = scmp.eq.s32.totalorder %s10, 1
    %p156 = por %p154, %p155
    %p157 = scmp.ne.s32.totalorder %s149, %s152
    %p158 = scmp.eq.s32.totalorder %s10, 0
    %p159 = por %p157, %p158
    %p160 = scmp.ne.s32.totalorder %s149, %s152
    %p161 = scmp.eq.s32.totalorder %s15, 1
    %p162 = por %p160, %p161
    %p163 = scmp.ne.s32.totalorder %s152, %s153
    %p164 = scmp.eq.s32.totalorder %s15, 0
    %p165 = por %p163, %p164
    %p166 = scmp.ne.s32.totalorder %s152, %s153
    %p167 = scmp.eq.s32.totalorder %s16, 1
    %p168 = por %p166, %p167
    %p170 = scmp.ne.s32.totalorder %s153, %s169
    %p171 = scmp.eq.s32.totalorder %s16, 0
    %p172 = por %p170, %p171
    %p173 = scmp.le.s32.totalorder 1, %s10
    %p174 = scmp.lt.s32.totalorder %s10, 3
    %p175 = pnand %p173, %p174
    %p176 = pneg %p175
    // Predicated region
    $region9: #{basic_conv2d_forward.1} parent=5 // pred_check
      _
    $region10: #{basic_conv2d_forward.1} parent=5 // pred_check_branch
      %178 = sbr.rel (%p175) target = $region12
    $region11: #{basic_conv2d_forward.1} parent=5 // pred_region
      %s179 = ssub.s32 %s10, 1
      // Predicated region
      $region13: #{basic_conv2d_forward.1} parent=11 // pred_check
        %p180 = pneg %p83
      $region14: #{basic_conv2d_forward.1} parent=11 // pred_check_branch
        %182 = sbr.rel (%p180) target = $region16
      $region15: #{basic_conv2d_forward.1} parent=11 // pred_region
        %p183 = scmp.lt.s32.totalorder %s22, 0
        %s184 = scalar_select %p183, %s22, 0
        %s185 = smul.addr %s184, 2
        %s186 = smul.addr %s185, 4
        %s187 = scalar_lea.vmem %s1, %s186
      $region16: #{basic_conv2d_forward.1} parent=11 // pred_fallthru
        _
      // Predicated region
      $region17: #{basic_conv2d_forward.1} parent=11 // pred_check
        %p188 = pneg %p109
      $region18: #{basic_conv2d_forward.1} parent=11 // pred_check_branch
        %190 = sbr.rel (%p188) target = $region20
      $region19: #{basic_conv2d_forward.1} parent=11 // pred_region
        %p191 = scmp.lt.s32.totalorder %s22, 0
        %s192 = scalar_select %p191, %s22, 0
        %s193 = smul.addr %s192, 8
        %s194 = scalar_lea.vmem %s2, %s193
      $region20: #{basic_conv2d_forward.1} parent=11 // pred_fallthru
        _
      // Predicated region
      $region21: #{basic_conv2d_forward.1} parent=11 // pred_check
        %p195 = pneg %p135
      $region22: #{basic_conv2d_forward.1} parent=11 // pred_check_branch
        %197 = sbr.rel (%p195) target = $region24
      $region23: #{basic_conv2d_forward.1} parent=11 // pred_region
        %p198 = scmp.lt.s32.totalorder %s22, 0
        %s199 = scalar_select %p198, %s22, 0
        %s200 = smul.addr %s199, 8
        %s201 = scalar_lea.vmem %s3, %s200
      $region24: #{basic_conv2d_forward.1} parent=11 // pred_fallthru
        _
    $region12: #{basic_conv2d_forward.1} parent=5 // pred_fallthru
      _
    %p202 = scmp.lt.s32.totalorder %s10, 2
    // Predicated region
    $region25: #{basic_conv2d_forward.1} parent=5 // pred_check
      %p203 = pneg %p202
    $region26: #{basic_conv2d_forward.1} parent=5 // pred_check_branch
      %205 = sbr.rel (%p203) target = $region28
    $region27: #{basic_conv2d_forward.1} parent=5 // pred_region
      // Predicated region
      $region29: #{basic_conv2d_forward.1} parent=27 // pred_check
        %p206 = pneg %p51
      $region30: #{basic_conv2d_forward.1} parent=27 // pred_check_branch
        %208 = sbr.rel (%p206) target = $region32
      $region31: #{basic_conv2d_forward.1} parent=27 // pred_region
        %p209 = scmp.lt.s32.totalorder %s17, 1
        %s210 = scalar_select %p209, %s17, 1
        %p211 = scmp.lt.s32.totalorder %s18, 0
        %s212 = scalar_select %p211, %s18, 0
        %s213 = smul.addr %s212, 8
        %s214 = smul.addr %s210, 8
        %s215 = sadd.s32 %s213, %s214
        %s216 = smul.addr %s215, 4
        %s217 = scalar_lea.vmem %s0, %s216
      $region32: #{basic_conv2d_forward.1} parent=27 // pred_fallthru
        _
    $region28: #{basic_conv2d_forward.1} parent=5 // pred_fallthru
      _
    %p218 = scmp.le.s32.totalorder 1, %s10
    %p219 = scmp.lt.s32.totalorder %s10, 3
    %p220 = pnand %p218, %p219
    %p221 = pneg %p220
    // Predicated region
    $region33: #{basic_conv2d_forward.1} parent=5 // pred_check
      _
    $region34: #{basic_conv2d_forward.1} parent=5 // pred_check_branch
      %223 = sbr.rel (%p220) target = $region36
    $region35: #{basic_conv2d_forward.1} parent=5 // pred_region
      %s224 = ssub.s32 %s10, 1
      %p225 = scmp.lt.s32.totalorder %s20, 1
      %s226 = scalar_select %p225, %s20, 1
      %p227 = scmp.lt.s32.totalorder %s21, 0
      %s228 = scalar_select %p227, %s21, 0
      %s229 = smul.addr %s228, 8
      %s230 = smul.addr %s226, 8
      %s231 = sadd.s32 %s229, %s230
      %s232 = smul.addr %s231, 4
      %s233 = scalar_lea.vmem %s0, %s232
      %p234 = pneg %p57
      %p235 = pneg %p54
      %p236 = scmp.lt.s32.totalorder %s22, 0
      %s237 = scalar_select %p236, %s22, 0
      %s238 = smul.addr %s237, 2
      %s239 = smul.addr %s238, 4
      %s240 = scalar_lea.vmem %s1, %s239
      %p241 = pneg %p83
      %p242 = pneg %p80
      %p243 = scmp.lt.s32.totalorder %s22, 0
      %s244 = scalar_select %p243, %s22, 0
      %s245 = smul.addr %s244, 8
      %s246 = scalar_lea.vmem %s2, %s245
      %p247 = pneg %p109
      %p248 = pneg %p106
      %p249 = scmp.lt.s32.totalorder %s22, 0
      %s250 = scalar_select %p249, %s22, 0
      %s251 = smul.addr %s250, 8
      %s252 = scalar_lea.vmem %s3, %s251
      %p253 = pneg %p135
      %p254 = pneg %p132
      %p255 = pneg %p165
      %p256 = pneg %p162
      %s257 = smul.u32 3, %s21
      %p258 = scmp.lt.s32.totalorder %s20, 1
      %s259 = scalar_select %p258, %s20, 1
      %p260 = scmp.lt.s32.totalorder %s22, 0
      %s261 = scalar_select %p260, %s22, 0
      %p262 = scmp.lt.s32.totalorder %s257, 2
      %s263 = scalar_select %p262, %s257, 2
      %s264 = smul.addr %s261, 3
      %s265 = sadd.s32 %s263, %s264
      %s266 = smul.addr %s259, 3
      %s267 = sadd.s32 %s265, %s266
      %s268 = smul.addr %s267, 4
      %s269 = scalar_lea.vmem %s4, %s268
      %p270 = scmp.lt.s32.totalorder %s20, 1
      %s271 = scalar_select %p270, %s20, 1
      %p272 = scmp.lt.s32.totalorder %s21, 0
      %s273 = scalar_select %p272, %s21, 0
      %s274 = smul.addr %s273, 8
      %s275 = smul.addr %s271, 8
      %s276 = sadd.s32 %s274, %s275
      %s277 = smul.addr %s276, 4
      %s278 = scalar_lea.vmem %s0, %s277
      %p279 = scmp.lt.s32.totalorder %s22, 0
      %s280 = scalar_select %p279, %s22, 0
      %s281 = smul.addr %s280, 2
      %s282 = smul.addr %s281, 4
      %s283 = scalar_lea.vmem %s1, %s282
      %p284 = scmp.lt.s32.totalorder %s22, 0
      %s285 = scalar_select %p284, %s22, 0
      %s286 = smul.addr %s285, 8
      %s287 = scalar_lea.vmem %s2, %s286
      %p288 = scmp.lt.s32.totalorder %s22, 0
      %s289 = scalar_select %p288, %s22, 0
      %s290 = smul.addr %s289, 8
      %s291 = scalar_lea.vmem %s3, %s290
      %s292 = smul.u32 3, %s21
      %p293 = scmp.lt.s32.totalorder %s20, 1
      %s294 = scalar_select %p293, %s20, 1
      %p295 = scmp.lt.s32.totalorder %s22, 0
      %s296 = scalar_select %p295, %s22, 0
      %p297 = scmp.lt.s32.totalorder %s292, 2
      %s298 = scalar_select %p297, %s292, 2
      %s299 = smul.addr %s296, 3
      %s300 = sadd.s32 %s298, %s299
      %s301 = smul.addr %s294, 3
      %s302 = sadd.s32 %s300, %s301
      %s303 = smul.addr %s302, 4
      %s304 = scalar_lea.vmem %s4, %s303
      %s305 = smul.u32 3, %s21
      %p307 = scmp.eq.s32.totalorder %s22, 0
      // Predicated region
      $region37: #{basic_conv2d_forward.1} parent=35 // pred_check
        %p308 = pneg %p307
      $region38: #{basic_conv2d_forward.1} parent=35 // pred_check_branch
        %310 = sbr.rel (%p308) target = $region40
      $region39: #{basic_conv2d_forward.1} parent=35 // pred_region
        %v311 = vld [vmem:[%s278] sm:$0xff]
        %v312 = vld [vmem:[%s278 + $0x8] sm:$0xf]
        %v313 = vld [vmem:[%s278 + $0x10] sm:$0xff]
        %v314 = vld [vmem:[%s278 + $0x18] sm:$0xf]
        %315 = vst [vmem:[#allocation2] sm:$0xff] %v311
        %316 = vst [vmem:[#allocation2 + $0x8] sm:$0xf] %v312
        %317 = vst [vmem:[#allocation2 + $0xc] sm:$0xff] %v313
        %318 = vst [vmem:[#allocation2 + $0x14] sm:$0xf] %v314
        %v319 = vld [vmem:[%s278] sm:$0xff]
        %v320 = vld [vmem:[%s278 + $0x8] sm:$0xff]
        %v321 = vld [vmem:[%s278 + $0x10] sm:$0xff]
        %v322 = vld [vmem:[%s278 + $0x18] sm:$0xff]
        %327 = vrot.lane.b32.xlu0 %v319, 127
        %v328 = vpop.permute.xlu0 %327
        %329 = vrot.lane.b32.xlu0 %v320, 127
        %v330 = vpop.permute.xlu0 %329
        %331 = vrot.lane.b32.xlu0 %v321, 127
        %v332 = vpop.permute.xlu0 %331
        %333 = vrot.lane.b32.xlu0 %v322, 127
        %v334 = vpop.permute.xlu0 %333
        %v335 = vrot.slane %v328, 4
        %v336 = vrot.slane %v330, 4
        %v337 = vrot.slane %v332, 4
        %v338 = vrot.slane %v334, 4
        %vm339 = vcmask 1043456
        %v340 = vsel %vm339, %v335, %v336
        %vm341 = vcmask 1039360
        %v342 = vsel %vm341, %v328, %v340
        %v343 = vsel %vm341, %v330, %v336
        %v344 = vsel %vm339, %v337, %v338
        %v345 = vsel %vm341, %v332, %v344
        %v346 = vsel %vm341, %v334, %v338
        %351 = vst [vmem:[#allocation2 + $0x18] sm:$0xff] %v342
        %352 = vst [vmem:[#allocation2 + $0x20] sm:$0xf] %v343
        %353 = vst [vmem:[#allocation2 + $0x24] sm:$0xff] %v345
        %354 = vst [vmem:[#allocation2 + $0x2c] sm:$0xf] %v346
        %v355 = vld [vmem:[%s278] sm:$0xff]
        %v356 = vld [vmem:[%s278 + $0x8] sm:$0xff]
        %v357 = vld [vmem:[%s278 + $0x10] sm:$0xff]
        %v358 = vld [vmem:[%s278 + $0x18] sm:$0xff]
        %363 = vrot.lane.b32.xlu0 %v355, 126
        %v364 = vpop.permute.xlu0 %363
        %365 = vrot.lane.b32.xlu0 %v356, 126
        %v366 = vpop.permute.xlu0 %365
        %367 = vrot.lane.b32.xlu0 %v357, 126
        %v368 = vpop.permute.xlu0 %367
        %369 = vrot.lane.b32.xlu0 %v358, 126
        %v370 = vpop.permute.xlu0 %369
        %v371 = vrot.slane %v364, 4
        %v372 = vrot.slane %v366, 4
        %v373 = vrot.slane %v368, 4
        %v374 = vrot.slane %v370, 4
        %v375 = vsel %vm339, %v371, %v372
        %vm376 = vcmask 1031168
        %v377 = vsel %vm376, %v364, %v375
        %v378 = vsel %vm376, %v366, %v372
        %v379 = vsel %vm339, %v373, %v374
        %v380 = vsel %vm376, %v368, %v379
        %v381 = vsel %vm376, %v370, %v374
        %386 = vst [vmem:[#allocation2 + $0x30] sm:$0xff] %v377
        %387 = vst [vmem:[#allocation2 + $0x38] sm:$0xf] %v378
        %388 = vst [vmem:[#allocation2 + $0x3c] sm:$0xff] %v380
        %389 = vst [vmem:[#allocation2 + $0x44] sm:$0xf] %v381
        %v390 = vld [vmem:[%s278] sm:$0xff]
        %v391 = vld [vmem:[%s278 + $0x8] sm:$0xff]
        %v392 = vld [vmem:[%s278 + $0x10] sm:$0xff]
        %v393 = vld [vmem:[%s278 + $0x18] sm:$0xff]
        %398 = vrot.lane.b32.xlu0 %v390, 110
        %v399 = vpop.permute.xlu0 %398
        %400 = vrot.lane.b32.xlu0 %v391, 110
        %v401 = vpop.permute.xlu0 %400
        %402 = vrot.lane.b32.xlu0 %v392, 110
        %v403 = vpop.permute.xlu0 %402
        %404 = vrot.lane.b32.xlu0 %v393, 110
        %v405 = vpop.permute.xlu0 %404
        %v406 = vrot.slane %v399, 4
        %v407 = vrot.slane %v401, 4
        %v408 = vrot.slane %v403, 4
        %v409 = vrot.slane %v405, 4
        %v410 = vsel %vm339, %v406, %v407
        %vm411 = vcmask 900096
        %v412 = vsel %vm411, %v399, %v410
        %v413 = vsel %vm411, %v401, %v407
        %v414 = vsel %vm339, %v408, %v409
        %v415 = vsel %vm411, %v403, %v414
        %v416 = vsel %vm411, %v405, %v409
        %421 = vst [vmem:[#allocation2 + $0x48] sm:$0xff] %v412
        %422 = vst [vmem:[#allocation2 + $0x50] sm:$0xf] %v413
        %423 = vst [vmem:[#allocation2 + $0x54] sm:$0xff] %v415
        %424 = vst [vmem:[#allocation2 + $0x5c] sm:$0xf] %v416
        %v425 = vld [vmem:[%s278] sm:$0xff]
        %v426 = vld [vmem:[%s278 + $0x8] sm:$0xff]
        %v427 = vld [vmem:[%s278 + $0x10] sm:$0xff]
        %v428 = vld [vmem:[%s278 + $0x18] sm:$0xff]
        %433 = vrot.lane.b32.xlu0 %v425, 109
        %v434 = vpop.permute.xlu0 %433
        %435 = vrot.lane.b32.xlu0 %v426, 109
        %v436 = vpop.permute.xlu0 %435
        %437 = vrot.lane.b32.xlu0 %v427, 109
        %v438 = vpop.permute.xlu0 %437
        %439 = vrot.lane.b32.xlu0 %v428, 109
        %v440 = vpop.permute.xlu0 %439
        %v441 = vrot.slane %v434, 4
        %v442 = vrot.slane %v436, 4
        %v443 = vrot.slane %v438, 4
        %v444 = vrot.slane %v440, 4
        %v445 = vsel %vm339, %v441, %v442
        %vm446 = vcmask 891904
        %v447 = vsel %vm446, %v434, %v445
        %v448 = vsel %vm446, %v436, %v442
        %v449 = vsel %vm339, %v443, %v444
        %v450 = vsel %vm446, %v438, %v449
        %v451 = vsel %vm446, %v440, %v444
        %456 = vst [vmem:[#allocation2 + $0x60] sm:$0xff] %v447
        %457 = vst [vmem:[#allocation2 + $0x68] sm:$0xf] %v448
        %458 = vst [vmem:[#allocation2 + $0x6c] sm:$0xff] %v450
        %459 = vst [vmem:[#allocation2 + $0x74] sm:$0xf] %v451
        %v460 = vld [vmem:[%s278] sm:$0xff]
        %v461 = vld [vmem:[%s278 + $0x8] sm:$0xff]
        %v462 = vld [vmem:[%s278 + $0x10] sm:$0xff]
        %v463 = vld [vmem:[%s278 + $0x18] sm:$0xff]
        %468 = vrot.lane.b32.xlu0 %v460, 108
        %v469 = vpop.permute.xlu0 %468
        %470 = vrot.lane.b32.xlu0 %v461, 108
        %v471 = vpop.permute.xlu0 %470
        %472 = vrot.lane.b32.xlu0 %v462, 108
        %v473 = vpop.permute.xlu0 %472
        %474 = vrot.lane.b32.xlu0 %v463, 108
        %v475 = vpop.permute.xlu0 %474
        %v476 = vrot.slane %v469, 4
        %v477 = vrot.slane %v471, 4
        %v478 = vrot.slane %v473, 4
        %v479 = vrot.slane %v475, 4
        %v480 = vsel %vm339, %v476, %v477
        %vm481 = vcmask 883712
        %v482 = vsel %vm481, %v469, %v480
        %v483 = vsel %vm481, %v471, %v477
        %v484 = vsel %vm339, %v478, %v479
        %v485 = vsel %vm481, %v473, %v484
        %v486 = vsel %vm481, %v475, %v479
        %491 = vst [vmem:[#allocation2 + $0x78] sm:$0xff] %v482
        %492 = vst [vmem:[#allocation2 + $0x80] sm:$0xf] %v483
        %493 = vst [vmem:[#allocation2 + $0x84] sm:$0xff] %v485
        %494 = vst [vmem:[#allocation2 + $0x8c] sm:$0xf] %v486
        %v495 = vld [vmem:[%s278] sm:$0xff]
        %v496 = vld [vmem:[%s278 + $0x8] sm:$0xff]
        %v497 = vld [vmem:[%s278 + $0x10] sm:$0xff]
        %v498 = vld [vmem:[%s278 + $0x18] sm:$0xff]
        %503 = vrot.lane.b32.xlu0 %v495, 92
        %v504 = vpop.permute.xlu0 %503
        %505 = vrot.lane.b32.xlu0 %v496, 92
        %v506 = vpop.permute.xlu0 %505
        %507 = vrot.lane.b32.xlu0 %v497, 92
        %v508 = vpop.permute.xlu0 %507
        %509 = vrot.lane.b32.xlu0 %v498, 92
        %v510 = vpop.permute.xlu0 %509
        %v511 = vrot.slane %v504, 4
        %v512 = vrot.slane %v506, 4
        %v513 = vrot.slane %v508, 4
        %v514 = vrot.slane %v510, 4
        %v515 = vsel %vm339, %v511, %v512
        %vm516 = vcmask 752640
        %v517 = vsel %vm516, %v504, %v515
        %v518 = vsel %vm516, %v506, %v512
        %v519 = vsel %vm339, %v513, %v514
        %v520 = vsel %vm516, %v508, %v519
        %v521 = vsel %vm516, %v510, %v514
        %526 = vst [vmem:[#allocation2 + $0x90] sm:$0xff] %v517
        %527 = vst [vmem:[#allocation2 + $0x98] sm:$0xf] %v518
        %528 = vst [vmem:[#allocation2 + $0x9c] sm:$0xff] %v520
        %529 = vst [vmem:[#allocation2 + $0xa4] sm:$0xf] %v521
        %v530 = vld [vmem:[%s278] sm:$0xff]
        %v531 = vld [vmem:[%s278 + $0x8] sm:$0xff]
        %v532 = vld [vmem:[%s278 + $0x10] sm:$0xff]
        %v533 = vld [vmem:[%s278 + $0x18] sm:$0xff]
        %538 = vrot.lane.b32.xlu0 %v530, 91
        %v539 = vpop.permute.xlu0 %538
        %540 = vrot.lane.b32.xlu0 %v531, 91
        %v541 = vpop.permute.xlu0 %540
        %542 = vrot.lane.b32.xlu0 %v532, 91
        %v543 = vpop.permute.xlu0 %542
        %544 = vrot.lane.b32.xlu0 %v533, 91
        %v545 = vpop.permute.xlu0 %544
        %v546 = vrot.slane %v539, 4
        %v547 = vrot.slane %v541, 4
        %v548 = vrot.slane %v543, 4
        %v549 = vrot.slane %v545, 4
        %v550 = vsel %vm339, %v546, %v547
        %vm551 = vcmask 744448
        %v552 = vsel %vm551, %v539, %v550
        %v553 = vsel %vm551, %v541, %v547
        %v554 = vsel %vm339, %v548, %v549
        %v555 = vsel %vm551, %v543, %v554
        %v556 = vsel %vm551, %v545, %v549
        %561 = vst [vmem:[#allocation2 + $0xa8] sm:$0xff] %v552
        %562 = vst [vmem:[#allocation2 + $0xb0] sm:$0xf] %v553
        %563 = vst [vmem:[#allocation2 + $0xb4] sm:$0xff] %v555
        %564 = vst [vmem:[#allocation2 + $0xbc] sm:$0xf] %v556
        %v565 = vld [vmem:[%s278] sm:$0xff]
        %v566 = vld [vmem:[%s278 + $0x8] sm:$0xff]
        %v567 = vld [vmem:[%s278 + $0x10] sm:$0xff]
        %v568 = vld [vmem:[%s278 + $0x18] sm:$0xff]
        %573 = vrot.lane.b32.xlu0 %v565, 90
        %v574 = vpop.permute.xlu0 %573
        %575 = vrot.lane.b32.xlu0 %v566, 90
        %v576 = vpop.permute.xlu0 %575
        %577 = vrot.lane.b32.xlu0 %v567, 90
        %v578 = vpop.permute.xlu0 %577
        %579 = vrot.lane.b32.xlu0 %v568, 90
        %v580 = vpop.permute.xlu0 %579
        %v581 = vrot.slane %v574, 4
        %v582 = vrot.slane %v576, 4
        %v583 = vrot.slane %v578, 4
        %v584 = vrot.slane %v580, 4
        %v585 = vsel %vm339, %v581, %v582
        %vm586 = vcmask 736256
        %v587 = vsel %vm586, %v574, %v585
        %v588 = vsel %vm586, %v576, %v582
        %v589 = vsel %vm339, %v583, %v584
        %v590 = vsel %vm586, %v578, %v589
        %v591 = vsel %vm586, %v580, %v584
        %596 = vst [vmem:[#allocation2 + $0xc0] sm:$0xff] %v587
        %597 = vst [vmem:[#allocation2 + $0xc8] sm:$0xf] %v588
        %598 = vst [vmem:[#allocation2 + $0xcc] sm:$0xff] %v590
        %599 = vst [vmem:[#allocation2 + $0xd4] sm:$0xf] %v591
      $region40: #{basic_conv2d_forward.1} parent=35 // pred_fallthru
        _
      %v600 = vld [vmem:[%s283] sm:$0xff]
      %v601 = vld [vmem:[#allocation2] sm:$0xff]
      %v602 = vld [vmem:[#allocation2 + $0x8] sm:$0xf]
      %v603 = vld [vmem:[#allocation2 + $0xc] sm:$0xff]
      %v604 = vld [vmem:[#allocation2 + $0x14] sm:$0xf]
      %v605 = vld [vmem:[#allocation2 + $0x18] sm:$0xff]
      %v606 = vld [vmem:[#allocation2 + $0x20] sm:$0xf]
      %v607 = vld [vmem:[#allocation2 + $0x24] sm:$0xff]
      %v608 = vld [vmem:[#allocation2 + $0x2c] sm:$0xf]
      %v609 = vld [vmem:[#allocation2 + $0x30] sm:$0xff]
      %v610 = vld [vmem:[#allocation2 + $0x38] sm:$0xf]
      %v611 = vld [vmem:[#allocation2 + $0x3c] sm:$0xff]
      %v612 = vld [vmem:[#allocation2 + $0x44] sm:$0xf]
      %v613 = vld [vmem:[#allocation2 + $0x48] sm:$0xff]
      %v614 = vld [vmem:[#allocation2 + $0x50] sm:$0xf]
      %v615 = vld [vmem:[#allocation2 + $0x54] sm:$0xff]
      %v616 = vld [vmem:[#allocation2 + $0x5c] sm:$0xf]
      %v617 = vld [vmem:[#allocation2 + $0x60] sm:$0xff]
      %v618 = vld [vmem:[#allocation2 + $0x68] sm:$0xf]
      %v619 = vld [vmem:[#allocation2 + $0x6c] sm:$0xff]
      %v620 = vld [vmem:[#allocation2 + $0x74] sm:$0xf]
      %v621 = vld [vmem:[#allocation2 + $0x78] sm:$0xff]
      %v622 = vld [vmem:[#allocation2 + $0x80] sm:$0xf]
      %v623 = vld [vmem:[#allocation2 + $0x84] sm:$0xff]
      %v624 = vld [vmem:[#allocation2 + $0x8c] sm:$0xf]
      %v625 = vld [vmem:[#allocation2 + $0x90] sm:$0xff]
      %v626 = vld [vmem:[#allocation2 + $0x98] sm:$0xf]
      %v627 = vld [vmem:[#allocation2 + $0x9c] sm:$0xff]
      %v628 = vld [vmem:[#allocation2 + $0xa4] sm:$0xf]
      %v629 = vld [vmem:[#allocation2 + $0xa8] sm:$0xff]
      %v630 = vld [vmem:[#allocation2 + $0xb0] sm:$0xf]
      %v631 = vld [vmem:[#allocation2 + $0xb4] sm:$0xff]
      %v632 = vld [vmem:[#allocation2 + $0xbc] sm:$0xf]
      %v633 = vld [vmem:[#allocation2 + $0xc0] sm:$0xff]
      %v634 = vld [vmem:[#allocation2 + $0xc8] sm:$0xf]
      %v635 = vld [vmem:[#allocation2 + $0xcc] sm:$0xff]
      %v636 = vld [vmem:[#allocation2 + $0xd4] sm:$0xf]
      %v638 = vunpack.c.l.b16 %v600
      %v639 = vunpack.c.h.b16 %v600
      %v640 = vpack.c.b16 %v638, %v638
      %v641 = vpack.c.b16 %v639, %v639
      %v679 = vunpack.c.l.b16 %v601
      %v680 = vunpack.c.h.b16 %v601
      %v681 = vunpack.c.l.b16 %v602
      %v682 = vunpack.c.l.b16 %v603
      %v683 = vunpack.c.h.b16 %v603
      %v684 = vunpack.c.l.b16 %v604
      %v685 = vunpack.c.l.b16 %v605
      %v686 = vunpack.c.h.b16 %v605
      %v687 = vunpack.c.l.b16 %v606
      %v688 = vunpack.c.l.b16 %v607
      %v689 = vunpack.c.h.b16 %v607
      %v690 = vunpack.c.l.b16 %v608
      %v691 = vunpack.c.l.b16 %v609
      %v692 = vunpack.c.h.b16 %v609
      %v693 = vunpack.c.l.b16 %v610
      %v694 = vunpack.c.l.b16 %v611
      %v695 = vunpack.c.h.b16 %v611
      %v696 = vunpack.c.l.b16 %v612
      %v697 = vunpack.c.l.b16 %v613
      %v698 = vunpack.c.h.b16 %v613
      %v699 = vunpack.c.l.b16 %v614
      %v700 = vunpack.c.l.b16 %v615
      %v701 = vunpack.c.h.b16 %v615
      %v702 = vunpack.c.l.b16 %v616
      %v703 = vunpack.c.l.b16 %v617
      %v704 = vunpack.c.h.b16 %v617
      %v705 = vunpack.c.l.b16 %v618
      %v706 = vunpack.c.l.b16 %v619
      %v707 = vunpack.c.h.b16 %v619
      %v708 = vunpack.c.l.b16 %v620
      %v709 = vunpack.c.l.b16 %v621
      %v710 = vunpack.c.h.b16 %v621
      %v711 = vunpack.c.l.b16 %v622
      %v712 = vunpack.c.l.b16 %v623
      %v713 = vunpack.c.h.b16 %v623
      %v714 = vunpack.c.l.b16 %v624
      %v715 = vunpack.c.l.b16 %v625
      %v716 = vunpack.c.h.b16 %v625
      %v717 = vunpack.c.l.b16 %v626
      %v718 = vunpack.c.l.b16 %v627
      %v719 = vunpack.c.h.b16 %v627
      %v720 = vunpack.c.l.b16 %v628
      %v721 = vunpack.c.l.b16 %v629
      %v722 = vunpack.c.h.b16 %v629
      %v723 = vunpack.c.l.b16 %v630
      %v724 = vunpack.c.l.b16 %v631
      %v725 = vunpack.c.h.b16 %v631
      %v726 = vunpack.c.l.b16 %v632
      %v727 = vunpack.c.l.b16 %v633
      %v728 = vunpack.c.h.b16 %v633
      %v729 = vunpack.c.l.b16 %v634
      %v730 = vunpack.c.l.b16 %v635
      %v731 = vunpack.c.h.b16 %v635
      %v732 = vunpack.c.l.b16 %v636
      %v733 = vpack.c.b16 %v682, %v679
      %v734 = vpack.c.b16 %v683, %v680
      %v735 = vpack.c.b16 %v684, %v681
      %v736 = vpack.c.b16 %v688, %v685
      %v737 = vpack.c.b16 %v689, %v686
      %v738 = vpack.c.b16 %v690, %v687
      %v739 = vpack.c.b16 %v694, %v691
      %v740 = vpack.c.b16 %v695, %v692
      %v741 = vpack.c.b16 %v696, %v693
      %v742 = vpack.c.b16 %v700, %v697
      %v743 = vpack.c.b16 %v701, %v698
      %v744 = vpack.c.b16 %v702, %v699
      %v745 = vpack.c.b16 %v706, %v703
      %v746 = vpack.c.b16 %v707, %v704
      %v747 = vpack.c.b16 %v708, %v705
      %v748 = vpack.c.b16 %v712, %v709
      %v749 = vpack.c.b16 %v713, %v710
      %v750 = vpack.c.b16 %v714, %v711
      %v751 = vpack.c.b16 %v718, %v715
      %v752 = vpack.c.b16 %v719, %v716
      %v753 = vpack.c.b16 %v720, %v717
      %v754 = vpack.c.b16 %v724, %v721
      %v755 = vpack.c.b16 %v725, %v722
      %v756 = vpack.c.b16 %v726, %v723
      %v757 = vpack.c.b16 %v730, %v727
      %v758 = vpack.c.b16 %v731, %v728
      %v759 = vpack.c.b16 %v732, %v729
      %vm787 = vcmask 130048
      %v789 = vsel %vm787, %v641, 0
      %791 = vmatpush.bf16.msra.mxu0 %v754
      %792 = vmatpush.bf16.msra.mxu0 %v751
      %793 = vmatpush.bf16.msra.mxu0 %v748
      %794 = vmatpush.bf16.msra.mxu0 %v745
      %795 = vmatpush.bf16.msra.mxu0 %v742
      %796 = vmatpush.bf16.msra.mxu0 %v739
      %797 = vmatpush.bf16.msra.mxu0 %v736
      %798 = vmatpush.bf16.msra.mxu0 %v733
      %799 = vmatmul.bf16.gmra.mxu0 %v640
      %v800 = vpop.f32.mrf.mxu0
      %v801 = vadd.f32 0.0, %v800
      %v802 = vpop.f32.mrf.mxu0
      %803 = vdwg.mxu0
      %804 = vmatpush.bf16.msra.mxu0 0
      %805 = vmatpush.bf16.msra.mxu0 0
      %806 = vmatpush.bf16.msra.mxu0 0
      %807 = vmatpush.bf16.msra.mxu0 0
      %808 = vmatpush.bf16.msra.mxu0 0
      %809 = vmatpush.bf16.msra.mxu0 0
      %810 = vmatpush.bf16.msra.mxu0 0
      %811 = vmatpush.bf16.msra.mxu0 %v757
      %812 = vmatmul.bf16.gmra.mxu0 %v789
      %v813 = vpop.f32.mrf.mxu0
      %v814 = vadd.f32 %v801, %v813
      %v815 = vpop.f32.mrf.mxu0
      %816 = vdwg.mxu0
      %817 = vmatpush.bf16.msra.mxu0 %v755
      %818 = vmatpush.bf16.msra.mxu0 %v752
      %819 = vmatpush.bf16.msra.mxu0 %v749
      %820 = vmatpush.bf16.msra.mxu0 %v746
      %821 = vmatpush.bf16.msra.mxu0 %v743
      %822 = vmatpush.bf16.msra.mxu0 %v740
      %823 = vmatpush.bf16.msra.mxu0 %v737
      %824 = vmatpush.bf16.msra.mxu0 %v734
      %825 = vmatmul.bf16.gmra.mxu0 %v640
      %v826 = vpop.f32.mrf.mxu0
      %v827 = vadd.f32 0.0, %v826
      %v828 = vpop.f32.mrf.mxu0
      %829 = vdwg.mxu0
      %830 = vmatpush.bf16.msra.mxu0 0
      %831 = vmatpush.bf16.msra.mxu0 0
      %832 = vmatpush.bf16.msra.mxu0 0
      %833 = vmatpush.bf16.msra.mxu0 0
      %834 = vmatpush.bf16.msra.mxu0 0
      %835 = vmatpush.bf16.msra.mxu0 0
      %836 = vmatpush.bf16.msra.mxu0 0
      %837 = vmatpush.bf16.msra.mxu0 %v758
      %838 = vmatmul.bf16.gmra.mxu0 %v789
      %v839 = vpop.f32.mrf.mxu0
      %v840 = vadd.f32 %v827, %v839
      %v841 = vpop.f32.mrf.mxu0
      %842 = vdwg.mxu0
      %843 = vmatpush.bf16.msra.mxu0 %v756
      %844 = vmatpush.bf16.msra.mxu0 %v753
      %845 = vmatpush.bf16.msra.mxu0 %v750
      %846 = vmatpush.bf16.msra.mxu0 %v747
      %847 = vmatpush.bf16.msra.mxu0 %v744
      %848 = vmatpush.bf16.msra.mxu0 %v741
      %849 = vmatpush.bf16.msra.mxu0 %v738
      %850 = vmatpush.bf16.msra.mxu0 %v735
      %851 = vmatmul.bf16.gmra.mxu0 %v640
      %v852 = vpop.f32.mrf.mxu0
      %v853 = vadd.f32 0.0, %v852
      %v854 = vpop.f32.mrf.mxu0
      %855 = vdwg.mxu0
      %856 = vmatpush.bf16.msra.mxu0 0
      %857 = vmatpush.bf16.msra.mxu0 0
      %858 = vmatpush.bf16.msra.mxu0 0
      %859 = vmatpush.bf16.msra.mxu0 0
      %860 = vmatpush.bf16.msra.mxu0 0
      %861 = vmatpush.bf16.msra.mxu0 0
      %862 = vmatpush.bf16.msra.mxu0 0
      %863 = vmatpush.bf16.msra.mxu0 %v759
      %864 = vmatmul.bf16.gmra.mxu0 %v789
      %v865 = vpop.f32.mrf.mxu0
      %v866 = vadd.f32 %v853, %v865
      %v867 = vpop.f32.mrf.mxu0
      %868 = vdwg.mxu0
      %v869 = vld [vmem:[%s287] sm:$0xff]
      %871 = vset.pattern.permute.xlu0 0
      %872 = vperm.xlu0 %871, %v869
      %v873 = vpop.permute.xlu0 %872
      %v875 = vmul.f32 %v814, %v873
      %v876 = vmul.f32 %v840, %v873
      %v877 = vmul.f32 %v866, %v873
      %v878 = vld [vmem:[%s291] sm:$0xff]
      %880 = vset.pattern.permute.xlu0 0
      %881 = vperm.xlu0 %880, %v878
      %v882 = vpop.permute.xlu0 %881
      %v884 = vadd.f32 %v875, %v882
      %v885 = vadd.f32 %v876, %v882
      %v886 = vadd.f32 %v877, %v882
      %v887 = vmax.f32 %v884, 0.0
      %v888 = vmax.f32 %v885, 0.0
      %v889 = vmax.f32 %v886, 0.0
      %v890 = vpack.c.bf16 %v888, %v887
      %v891 = vpack.c.bf16 %v889, %v889
      %892 = vst [vmem:[%s304] sm:$0xff] %v890
      %893 = vst [vmem:[%s304 + $0x8] sm:$0xf] %v891
      %s894 = smul.u32 3, %s21
      %p895 = scmp.lt.s32.totalorder %s20, 1
      %s896 = scalar_select %p895, %s20, 1
      %p897 = scmp.lt.s32.totalorder %s22, 0
      %s898 = scalar_select %p897, %s22, 0
      %p899 = scmp.lt.s32.totalorder %s894, 2
      %s900 = scalar_select %p899, %s894, 2
      %s901 = smul.addr %s898, 3
      %s902 = sadd.s32 %s900, %s901
      %s903 = smul.addr %s896, 3
      %s904 = sadd.s32 %s902, %s903
      %s905 = smul.addr %s904, 4
      %s906 = scalar_lea.vmem %s4, %s905
      // Predicated region
      $region41: #{basic_conv2d_forward.1} parent=35 // pred_check
        %p907 = pneg %p162
      $region42: #{basic_conv2d_forward.1} parent=35 // pred_check_branch
        %909 = sbr.rel (%p907) target = $region44
      $region43: #{basic_conv2d_forward.1} parent=35 // pred_region
        %s910 = smul.u32 3, %s21
      $region44: #{basic_conv2d_forward.1} parent=35 // pred_fallthru
        _
    $region36: #{basic_conv2d_forward.1} parent=5 // pred_fallthru
      _
    %p911 = scmp.le.s32.totalorder 2, %s10
    // Predicated region
    $region45: #{basic_conv2d_forward.1} parent=5 // pred_check
      %p912 = pneg %p911
    $region46: #{basic_conv2d_forward.1} parent=5 // pred_check_branch
      %914 = sbr.rel (%p912) target = $region48
    $region47: #{basic_conv2d_forward.1} parent=5 // pred_region
      %s915 = ssub.s32 %s10, 2
      // Predicated region
      $region49: #{basic_conv2d_forward.1} parent=47 // pred_check
        %p916 = pneg %p168
      $region50: #{basic_conv2d_forward.1} parent=47 // pred_check_branch
        %918 = sbr.rel (%p916) target = $region52
      $region51: #{basic_conv2d_forward.1} parent=47 // pred_region
        %s919 = smul.u32 3, %s24
        %p920 = scmp.lt.s32.totalorder %s23, 1
        %s921 = scalar_select %p920, %s23, 1
        %p922 = scmp.lt.s32.totalorder %s25, 0
        %s923 = scalar_select %p922, %s25, 0
        %p924 = scmp.lt.s32.totalorder %s919, 2
        %s925 = scalar_select %p924, %s919, 2
        %s926 = smul.addr %s923, 3
        %s927 = sadd.s32 %s925, %s926
        %s928 = smul.addr %s921, 3
        %s929 = sadd.s32 %s927, %s928
        %s930 = smul.addr %s929, 4
        %s931 = scalar_lea.vmem %s4, %s930
      $region52: #{basic_conv2d_forward.1} parent=47 // pred_fallthru
        _
    $region48: #{basic_conv2d_forward.1} parent=5 // pred_fallthru
      _
  $region6: #{basic_conv2d_forward.1} parent=0 // loop_footer
    %s14 = sadd.s32 1, %s10
  $region7: #{basic_conv2d_forward.1} parent=0 // loop_footer_branch
    %9 = sbr.rel target = $region3
  $region8: #{basic_conv2d_forward.1} parent=0 // loop_exit
    _

</llo_original>
